<compile_context>
chip_gen: v7x
topology: tpu7x:2x2x1
jax: 0.10.0
libtpu: 0.0.40
codegen_flags: <defaults>
</compile_context>

<pallas_src>
import functools

import jax
import jax.numpy as jnp
from jax import lax
from jax.experimental import pallas as pl
from jax.experimental.pallas import tpu as pltpu


_MAX_BATCH_TILE = 8192


def _round_up(n, m):
    return ((n + m - 1) // m) * m


def _autoencoder_kernel(x_ref,
                        w1_ref, b1_ref,
                        w2_ref, b2_ref,
                        w3_ref, b3_ref,
                        w4_ref, b4_ref,
                        o_ref):
    """Fused forward pass on one natural-layout batch tile.

    x_ref: (tb, D).  Weights are torch-layout (out, in) in the MXU dtype
    (bf16 by default); biases are f32 (out, 1) columns that broadcast along
    lanes for free.  All intermediates are (features, tb) — batch on lanes.
    """
    f32 = jnp.float32
    cdt = w1_ref.dtype                          # MXU operand dtype (bf16 / f32)

    x = x_ref[...].astype(cdt)                  # (tb, D)

    # Layer 1: h^T = W1 @ x^T  (contract feature axes of both operands)
    h = lax.dot_general(w1_ref[...], x, (((1,), (1,)), ((), ())),
                        preferred_element_type=f32)          # (32, tb)
    h = jnp.maximum(h + b1_ref[...], 0.0)

    # Layer 2: (16, tb)
    h = jnp.dot(w2_ref[...], h.astype(cdt), preferred_element_type=f32)
    h = jnp.maximum(h + b2_ref[...], 0.0)

    # Layer 3: (32, tb)
    h = jnp.dot(w3_ref[...], h.astype(cdt), preferred_element_type=f32)
    h = jnp.maximum(h + b3_ref[...], 0.0)

    # Layer 4 (output rows padded to a sublane multiple): (Dp, tb)
    y = jnp.dot(w4_ref[...], h.astype(cdt), preferred_element_type=f32)
    y = jax.nn.sigmoid(y + b4_ref[...])                       # lane-dense EUP

    # Back to natural (tb, D) layout for a contiguous HBM writeback.
    yt = y.T                                                  # XLU transpose
    o_ref[...] = yt[:, :o_ref.shape[1]]


@functools.partial(jax.jit, static_argnames=("batch_tile", "mxu_dtype"))
def autoencoder_forward(x, params, *, batch_tile=None, mxu_dtype=jnp.bfloat16):
    """x: (B, D) float32.  params: torch-layout weights (out, in), biases (out,)."""
    B, D = x.shape
    x = x.astype(jnp.float32)
    f32 = jnp.float32

    # Tiny batches: pad rows up to one 128-row tile (negligible bytes).
    # Otherwise feed the natural array directly — no transpose / pad passes.
    if B < 128:
        Bp = 128
        x_in = jnp.zeros((Bp, D), f32).at[:B].set(x)
    else:
        Bp, x_in = B, x

    if batch_tile is None:
        # Large lane tiles amortize the per-grid-step overhead; even step
        # count keeps both v7x TensorCores busy under "parallel" semantics.
        nsteps = 2 * pl.cdiv(Bp, 2 * _MAX_BATCH_TILE)
        tb = _round_up(pl.cdiv(Bp, nsteps), 128)
    else:
        tb = min(batch_tile, _round_up(Bp, 128))
    assert tb % 128 == 0, "batch_tile must be a multiple of 128"
    grid = (pl.cdiv(Bp, tb),)            # ragged last tile clamped by Pallas

    # Parameters: torch layout, MXU dtype for weights, f32 column biases.
    Dp = _round_up(D, 8)                 # pad decoder output rows to sublanes
    w1 = params["w1"].astype(mxu_dtype)                              # (32, D)
    w2 = params["w2"].astype(mxu_dtype)                              # (16, 32)
    w3 = params["w3"].astype(mxu_dtype)                              # (32, 16)
    w4 = jnp.zeros((Dp, 32), mxu_dtype).at[:D].set(
        params["w4"].astype(mxu_dtype))                              # (Dp, 32)
    b1 = params["b1"].astype(f32)[:, None]                           # (32, 1)
    b2 = params["b2"].astype(f32)[:, None]                           # (16, 1)
    b3 = params["b3"].astype(f32)[:, None]                           # (32, 1)
    b4 = jnp.zeros((Dp, 1), f32).at[:D, 0].set(params["b4"].astype(f32))

    def full(a):
        # small parameter, whole array resident in VMEM, fetched once
        return pl.BlockSpec(a.shape, lambda i: (0, 0))

    flops = 2 * Bp * (D * 32 + 32 * 16 + 16 * 32 + 32 * Dp)
    cost = pl.CostEstimate(flops=flops,
                           transcendentals=Bp * Dp,
                           bytes_accessed=2 * Bp * D * 4 + 8 * 1024)

    out = pl.pallas_call(
        _autoencoder_kernel,
        out_shape=jax.ShapeDtypeStruct((Bp, D), f32),
        grid_spec=pl.GridSpec(
            grid=grid,
            in_specs=[
                pl.BlockSpec((tb, D), lambda i: (i, 0)),   # natural x tile
                full(w1), full(b1),
                full(w2), full(b2),
                full(w3), full(b3),
                full(w4), full(b4),
            ],
            out_specs=pl.BlockSpec((tb, D), lambda i: (i, 0)),
        ),
        compiler_params=pltpu.CompilerParams(
            dimension_semantics=("parallel",),             # megacore over batch
            vmem_limit_bytes=32 * 1024 * 1024,
        ),
        cost_estimate=cost,
    )(x_in, w1, b1, w2, b2, w3, b3, w4, b4)

    return out if Bp == B else out[:B]


def init_params(key, input_dim):
    """torch nn.Linear-style init: U(-1/sqrt(fan_in), +1/sqrt(fan_in))."""
    dims = [(32, input_dim), (16, 32), (32, 16), (input_dim, 32)]
    params = {}
    for idx, (out_d, in_d) in enumerate(dims, start=1):
        key, kw, kb = jax.random.split(key, 3)
        bound = 1.0 / jnp.sqrt(jnp.float32(in_d))
        params[f"w{idx}"] = jax.random.uniform(
            kw, (out_d, in_d), jnp.float32, -bound, bound)
        params[f"b{idx}"] = jax.random.uniform(
            kb, (out_d,), jnp.float32, -bound, bound)
    return params


def _reference_forward(x, params):
    """Pure-JAX reference (same math as the PyTorch module)."""
    h = jax.nn.relu(x @ params["w1"].T + params["b1"])
    h = jax.nn.relu(h @ params["w2"].T + params["b2"])
    h = jax.nn.relu(h @ params["w3"].T + params["b3"])
    return jax.nn.sigmoid(h @ params["w4"].T + params["b4"])


if __name__ == "__main__":
    key = jax.random.PRNGKey(0)
    key, kx1, kx2, kp = jax.random.split(key, 4)

    input_dim = 20                              # MinMax-scaled tabular features
    params = init_params(kp, input_dim)

    # small batch: exercises the B < 128 padding path, single 128-row tile
    x_small = jax.random.uniform(kx1, (8, input_dim), jnp.float32)
    ref_small = _reference_forward(x_small, params)

    out_small = jax.block_until_ready(autoencoder_forward(x_small, params))
    assert out_small.shape == (8, input_dim)
    assert jnp.allclose(out_small, ref_small, atol=3e-2), "small (bf16 MXU) mismatch"

    # f32-MXU path must match the reference tightly (algorithmic correctness)
    out_small_f32 = jax.block_until_ready(
        autoencoder_forward(x_small, params, mxu_dtype=jnp.float32))
    assert jnp.allclose(out_small_f32, ref_small, atol=1e-5, rtol=1e-5), "f32 mismatch"

    # larger batch: multi-step grid with a ragged last tile, bf16 MXU
    x_large = jax.random.uniform(kx2, (1030, input_dim), jnp.float32)
    ref_large = _reference_forward(x_large, params)
    out_large = jax.block_until_ready(autoencoder_forward(x_large, params))
    assert out_large.shape == (1030, input_dim)
    assert jnp.allclose(out_large, ref_large, atol=3e-2), "large (bf16 MXU) mismatch"

    print("KERNEL_OK")
</pallas_src>

<mosaic_0001>
module attributes {stable_mosaic.version = 11 : i64} {
  func.func @_autoencoder_kernel(%arg0: i32, %arg1: memref<128x20xf32, #tpu.memory_space<vmem>>, %arg2: memref<32x20xbf16, #tpu.memory_space<vmem>>, %arg3: memref<32x1xf32, #tpu.memory_space<vmem>>, %arg4: memref<16x32xbf16, #tpu.memory_space<vmem>>, %arg5: memref<16x1xf32, #tpu.memory_space<vmem>>, %arg6: memref<32x16xbf16, #tpu.memory_space<vmem>>, %arg7: memref<32x1xf32, #tpu.memory_space<vmem>>, %arg8: memref<24x32xbf16, #tpu.memory_space<vmem>>, %arg9: memref<24x1xf32, #tpu.memory_space<vmem>>, %arg10: memref<128x20xf32, #tpu.memory_space<vmem>>) attributes {dimension_semantics = [#tpu.dimension_semantics<parallel>], iteration_bounds = array<i64: 1>, scalar_prefetch = 0 : i64, scratch_operands = 0 : i64, tpu.core_type = #tpu.core_type<tc>, window_params = [{transform_indices = @transform_0, window_bounds = array<i64: 128, 20>}, {pipeline_mode = #tpu.pipeline_mode<synchronous>, transform_indices = @transform_1, window_bounds = array<i64: 32, 20>}, {pipeline_mode = #tpu.pipeline_mode<synchronous>, transform_indices = @transform_2, window_bounds = array<i64: 32, 1>}, {pipeline_mode = #tpu.pipeline_mode<synchronous>, transform_indices = @transform_3, window_bounds = array<i64: 16, 32>}, {pipeline_mode = #tpu.pipeline_mode<synchronous>, transform_indices = @transform_4, window_bounds = array<i64: 16, 1>}, {pipeline_mode = #tpu.pipeline_mode<synchronous>, transform_indices = @transform_5, window_bounds = array<i64: 32, 16>}, {pipeline_mode = #tpu.pipeline_mode<synchronous>, transform_indices = @transform_6, window_bounds = array<i64: 32, 1>}, {pipeline_mode = #tpu.pipeline_mode<synchronous>, transform_indices = @transform_7, window_bounds = array<i64: 24, 32>}, {pipeline_mode = #tpu.pipeline_mode<synchronous>, transform_indices = @transform_8, window_bounds = array<i64: 24, 1>}, {transform_indices = @transform_9, window_bounds = array<i64: 128, 20>}]} {
    %c0 = arith.constant 0 : index
    %c0_0 = arith.constant 0 : index
    %0 = vector.load %arg1[%c0, %c0_0] : memref<128x20xf32, #tpu.memory_space<vmem>>, vector<128x20xf32>
    %1 = arith.truncf %0 : vector<128x20xf32> to vector<128x20xbf16>
    %c0_1 = arith.constant 0 : index
    %c0_2 = arith.constant 0 : index
    %2 = vector.load %arg2[%c0_1, %c0_2] : memref<32x20xbf16, #tpu.memory_space<vmem>>, vector<32x20xbf16>
    %cst = arith.constant dense<0.000000e+00> : vector<32x128xf32>
    %3 = tpu.matmul %2, %1, %cst {dimension_numbers = #tpu.dot_dimension_numbers<[1], [1], [0], [0], [0, 0, 1, 0], [], []>} : vector<32x20xbf16>, vector<128x20xbf16>, vector<32x128xf32> -> vector<32x128xf32>
    %c0_3 = arith.constant 0 : index
    %c0_4 = arith.constant 0 : index
    %4 = vector.load %arg3[%c0_3, %c0_4] : memref<32x1xf32, #tpu.memory_space<vmem>>, vector<32x1xf32>
    %5 = vector.broadcast %4 : vector<32x1xf32> to vector<32x128xf32>
    %6 = arith.addf %3, %5 : vector<32x128xf32>
    %cst_5 = arith.constant 0.000000e+00 : f32
    %7 = vector.broadcast %cst_5 : f32 to vector<32x128xf32>
    %8 = arith.maximumf %6, %7 : vector<32x128xf32>
    %c0_6 = arith.constant 0 : index
    %c0_7 = arith.constant 0 : index
    %9 = vector.load %arg4[%c0_6, %c0_7] : memref<16x32xbf16, #tpu.memory_space<vmem>>, vector<16x32xbf16>
    %10 = arith.truncf %8 : vector<32x128xf32> to vector<32x128xbf16>
    %cst_8 = arith.constant dense<0.000000e+00> : vector<16x128xf32>
    %11 = tpu.matmul %9, %10, %cst_8 {dimension_numbers = #tpu.dot_dimension_numbers<[1], [0], [0], [1], [0, 0, 1, 1], [], []>} : vector<16x32xbf16>, vector<32x128xbf16>, vector<16x128xf32> -> vector<16x128xf32>
    %c0_9 = arith.constant 0 : index
    %c0_10 = arith.constant 0 : index
    %12 = vector.load %arg5[%c0_9, %c0_10] : memref<16x1xf32, #tpu.memory_space<vmem>>, vector<16x1xf32>
    %13 = vector.broadcast %12 : vector<16x1xf32> to vector<16x128xf32>
    %14 = arith.addf %11, %13 : vector<16x128xf32>
    %cst_11 = arith.constant 0.000000e+00 : f32
    %15 = vector.broadcast %cst_11 : f32 to vector<16x128xf32>
    %16 = arith.maximumf %14, %15 : vector<16x128xf32>
    %c0_12 = arith.constant 0 : index
    %c0_13 = arith.constant 0 : index
    %17 = vector.load %arg6[%c0_12, %c0_13] : memref<32x16xbf16, #tpu.memory_space<vmem>>, vector<32x16xbf16>
    %18 = arith.truncf %16 : vector<16x128xf32> to vector<16x128xbf16>
    %cst_14 = arith.constant dense<0.000000e+00> : vector<32x128xf32>
    %19 = tpu.matmul %17, %18, %cst_14 {dimension_numbers = #tpu.dot_dimension_numbers<[1], [0], [0], [1], [0, 0, 1, 1], [], []>} : vector<32x16xbf16>, vector<16x128xbf16>, vector<32x128xf32> -> vector<32x128xf32>
    %c0_15 = arith.constant 0 : index
    %c0_16 = arith.constant 0 : index
    %20 = vector.load %arg7[%c0_15, %c0_16] : memref<32x1xf32, #tpu.memory_space<vmem>>, vector<32x1xf32>
    %21 = vector.broadcast %20 : vector<32x1xf32> to vector<32x128xf32>
    %22 = arith.addf %19, %21 : vector<32x128xf32>
    %cst_17 = arith.constant 0.000000e+00 : f32
    %23 = vector.broadcast %cst_17 : f32 to vector<32x128xf32>
    %24 = arith.maximumf %22, %23 : vector<32x128xf32>
    %c0_18 = arith.constant 0 : index
    %c0_19 = arith.constant 0 : index
    %25 = vector.load %arg8[%c0_18, %c0_19] : memref<24x32xbf16, #tpu.memory_space<vmem>>, vector<24x32xbf16>
    %26 = arith.truncf %24 : vector<32x128xf32> to vector<32x128xbf16>
    %cst_20 = arith.constant dense<0.000000e+00> : vector<24x128xf32>
    %27 = tpu.matmul %25, %26, %cst_20 {dimension_numbers = #tpu.dot_dimension_numbers<[1], [0], [0], [1], [0, 0, 1, 1], [], []>} : vector<24x32xbf16>, vector<32x128xbf16>, vector<24x128xf32> -> vector<24x128xf32>
    %c0_21 = arith.constant 0 : index
    %c0_22 = arith.constant 0 : index
    %28 = vector.load %arg9[%c0_21, %c0_22] : memref<24x1xf32, #tpu.memory_space<vmem>>, vector<24x1xf32>
    %29 = vector.broadcast %28 : vector<24x1xf32> to vector<24x128xf32>
    %30 = arith.addf %27, %29 : vector<24x128xf32>
    %31 = arith.negf %30 : vector<24x128xf32>
    %32 = math.exp %31 : vector<24x128xf32>
    %cst_23 = arith.constant 1.000000e+00 : f32
    %33 = vector.broadcast %cst_23 : f32 to vector<24x128xf32>
    %34 = arith.addf %33, %32 : vector<24x128xf32>
    %35 = arith.divf %33, %34 : vector<24x128xf32>
    %36 = tpu.transpose %35, [1, 0] : vector<24x128xf32> -> vector<128x24xf32>
    %37 = vector.extract_strided_slice %36 {offsets = [0, 0], sizes = [128, 20], strides = [1, 1]} : vector<128x24xf32> to vector<128x20xf32>
    %c0_24 = arith.constant 0 : index
    %c0_25 = arith.constant 0 : index
    %38 = vector.load %arg10[%c0_24, %c0_25] : memref<128x20xf32, #tpu.memory_space<vmem>>, vector<128x20xf32>
    tpu.vector_store %arg10[%c0_24, %c0_25], %37 {strides = array<i32>} : memref<128x20xf32, #tpu.memory_space<vmem>>, vector<128x20xf32>,
    return
  }
  func.func @transform_0(%arg0: i32) -> (i32, i32) {
    %c0_i32 = arith.constant 0 : i32
    %c0_i32_0 = arith.constant 0 : i32
    return %arg0, %c0_i32 : i32, i32
  }
  func.func @transform_1(%arg0: i32) -> (i32, i32) {
    %c0_i32 = arith.constant 0 : i32
    %c0_i32_0 = arith.constant 0 : i32
    %c0_i32_1 = arith.constant 0 : i32
    return %c0_i32, %c0_i32_0 : i32, i32
  }
  func.func @transform_2(%arg0: i32) -> (i32, i32) {
    %c0_i32 = arith.constant 0 : i32
    %c0_i32_0 = arith.constant 0 : i32
    %c0_i32_1 = arith.constant 0 : i32
    return %c0_i32, %c0_i32_0 : i32, i32
  }
  func.func @transform_3(%arg0: i32) -> (i32, i32) {
    %c0_i32 = arith.constant 0 : i32
    %c0_i32_0 = arith.constant 0 : i32
    %c0_i32_1 = arith.constant 0 : i32
    return %c0_i32, %c0_i32_0 : i32, i32
  }
  func.func @transform_4(%arg0: i32) -> (i32, i32) {
    %c0_i32 = arith.constant 0 : i32
    %c0_i32_0 = arith.constant 0 : i32
    %c0_i32_1 = arith.constant 0 : i32
    return %c0_i32, %c0_i32_0 : i32, i32
  }
  func.func @transform_5(%arg0: i32) -> (i32, i32) {
    %c0_i32 = arith.constant 0 : i32
    %c0_i32_0 = arith.constant 0 : i32
    %c0_i32_1 = arith.constant 0 : i32
    return %c0_i32, %c0_i32_0 : i32, i32
  }
  func.func @transform_6(%arg0: i32) -> (i32, i32) {
    %c0_i32 = arith.constant 0 : i32
    %c0_i32_0 = arith.constant 0 : i32
    %c0_i32_1 = arith.constant 0 : i32
    return %c0_i32, %c0_i32_0 : i32, i32
  }
  func.func @transform_7(%arg0: i32) -> (i32, i32) {
    %c0_i32 = arith.constant 0 : i32
    %c0_i32_0 = arith.constant 0 : i32
    %c0_i32_1 = arith.constant 0 : i32
    return %c0_i32, %c0_i32_0 : i32, i32
  }
  func.func @transform_8(%arg0: i32) -> (i32, i32) {
    %c0_i32 = arith.constant 0 : i32
    %c0_i32_0 = arith.constant 0 : i32
    %c0_i32_1 = arith.constant 0 : i32
    return %c0_i32, %c0_i32_0 : i32, i32
  }
  func.func @transform_9(%arg0: i32) -> (i32, i32) {
    %c0_i32 = arith.constant 0 : i32
    %c0_i32_0 = arith.constant 0 : i32
    return %arg0, %c0_i32 : i32, i32
  }
}

</mosaic_0001>

<llo_original>
// kernel: autoencoder_forward.1
$region0: #{autoencoder_forward.1}
  #allocation0 [shape = 'u32[]', space=smem, size = 0x4, offset = 0x4, fixed_abs, tag = 'smem constant byte address 0x4 - core index']
  #allocation1 [shape = 'u32[144,128]{1,0:T(1,128)}', space=vmem, size = 0x12000, scoped, tag = 'internal scratch']
  %s0 = inlined_call_operand.vmem [shape: f32[128,20], index: 0, kind: input, shape index: {}]
  %s1 = inlined_call_operand.vmem [shape: bf16[32,20], index: 1, kind: input, shape index: {}]
  %s2 = inlined_call_operand.vmem [shape: f32[32,1], index: 2, kind: input, shape index: {}]
  %s3 = inlined_call_operand.vmem [shape: bf16[16,32], index: 3, kind: input, shape index: {}]
  %s4 = inlined_call_operand.vmem [shape: f32[16,1], index: 4, kind: input, shape index: {}]
  %s5 = inlined_call_operand.vmem [shape: bf16[32,16], index: 5, kind: input, shape index: {}]
  %s6 = inlined_call_operand.vmem [shape: f32[32,1], index: 6, kind: input, shape index: {}]
  %s7 = inlined_call_operand.vmem [shape: bf16[24,32], index: 7, kind: input, shape index: {}]
  %s8 = inlined_call_operand.vmem [shape: f32[24,1], index: 8, kind: input, shape index: {}]
  %s9 = inlined_call_operand.vmem [shape: f32[128,20], index: 9, kind: output, shape index: {}]
  %s10 = sld [smem:[#allocation0]]
  $region46: #{autoencoder_forward.1} parent=0
    _
  %s12 = ssub.s32 1, %s10
  %s13 = scalar_select 0, %s12, %s10
  // Predicated region
  $region2: #{autoencoder_forward.1} parent=0 // pred_check
    _
  $region3: #{autoencoder_forward.1} parent=0 // pred_check_branch
    %15 = sbr.rel (0) target = $region5
  $region4: #{autoencoder_forward.1} parent=0 // pred_region
    _
  $region5: #{autoencoder_forward.1} parent=0 // pred_fallthru
    _
  // Predicated region
  $region6: #{autoencoder_forward.1} parent=0 // pred_check
    _
  $region7: #{autoencoder_forward.1} parent=0 // pred_check_branch
    %17 = sbr.rel (0) target = $region9
  $region8: #{autoencoder_forward.1} parent=0 // pred_region
    _
  $region9: #{autoencoder_forward.1} parent=0 // pred_fallthru
    _
  // Predicated region
  $region10: #{autoencoder_forward.1} parent=0 // pred_check
    _
  $region11: #{autoencoder_forward.1} parent=0 // pred_check_branch
    %19 = sbr.rel (0) target = $region13
  $region12: #{autoencoder_forward.1} parent=0 // pred_region
    _
  $region13: #{autoencoder_forward.1} parent=0 // pred_fallthru
    _
  // Predicated region
  $region14: #{autoencoder_forward.1} parent=0 // pred_check
    _
  $region15: #{autoencoder_forward.1} parent=0 // pred_check_branch
    %21 = sbr.rel (0) target = $region17
  $region16: #{autoencoder_forward.1} parent=0 // pred_region
    _
  $region17: #{autoencoder_forward.1} parent=0 // pred_fallthru
    _
  // Predicated region
  $region18: #{autoencoder_forward.1} parent=0 // pred_check
    _
  $region19: #{autoencoder_forward.1} parent=0 // pred_check_branch
    %23 = sbr.rel (0) target = $region21
  $region20: #{autoencoder_forward.1} parent=0 // pred_region
    _
  $region21: #{autoencoder_forward.1} parent=0 // pred_fallthru
    _
  // Predicated region
  $region22: #{autoencoder_forward.1} parent=0 // pred_check
    _
  $region23: #{autoencoder_forward.1} parent=0 // pred_check_branch
    %25 = sbr.rel (0) target = $region25
  $region24: #{autoencoder_forward.1} parent=0 // pred_region
    _
  $region25: #{autoencoder_forward.1} parent=0 // pred_fallthru
    _
  // Predicated region
  $region26: #{autoencoder_forward.1} parent=0 // pred_check
    _
  $region27: #{autoencoder_forward.1} parent=0 // pred_check_branch
    %27 = sbr.rel (0) target = $region29
  $region28: #{autoencoder_forward.1} parent=0 // pred_region
    _
  $region29: #{autoencoder_forward.1} parent=0 // pred_fallthru
    _
  // Predicated region
  $region30: #{autoencoder_forward.1} parent=0 // pred_check
    _
  $region31: #{autoencoder_forward.1} parent=0 // pred_check_branch
    %29 = sbr.rel (0) target = $region33
  $region32: #{autoencoder_forward.1} parent=0 // pred_region
    _
  $region33: #{autoencoder_forward.1} parent=0 // pred_fallthru
    _
  // Predicated region
  $region34: #{autoencoder_forward.1} parent=0 // pred_check
    _
  $region35: #{autoencoder_forward.1} parent=0 // pred_check_branch
    %31 = sbr.rel (0) target = $region37
  $region36: #{autoencoder_forward.1} parent=0 // pred_region
    _
  $region37: #{autoencoder_forward.1} parent=0 // pred_fallthru
    _
  %v33 = vld [vmem:[%s0] sm:$0xff]
  %v34 = vld [vmem:[%s0 + $0x8] sm:$0xff]
  %v35 = vld [vmem:[%s0 + $0x10] sm:$0xff]
  %v36 = vld [vmem:[%s0 + $0x18] sm:$0xff]
  %v37 = vld [vmem:[%s0 + $0x20] sm:$0xff]
  %v38 = vld [vmem:[%s0 + $0x28] sm:$0xff]
  %v39 = vld [vmem:[%s0 + $0x30] sm:$0xff]
  %v40 = vld [vmem:[%s0 + $0x38] sm:$0xff]
  %v41 = vld [vmem:[%s0 + $0x40] sm:$0xff]
  %v42 = vld [vmem:[%s0 + $0x48] sm:$0xff]
  %v43 = vld [vmem:[%s0 + $0x50] sm:$0xff]
  %v44 = vld [vmem:[%s0 + $0x58] sm:$0xff]
  %v45 = vld [vmem:[%s0 + $0x60] sm:$0xff]
  %v46 = vld [vmem:[%s0 + $0x68] sm:$0xff]
  %v47 = vld [vmem:[%s0 + $0x70] sm:$0xff]
  %v48 = vld [vmem:[%s0 + $0x78] sm:$0xff]
  %v49 = vpack.c.bf16 %v34, %v33
  %v50 = vpack.c.bf16 %v36, %v35
  %v51 = vpack.c.bf16 %v38, %v37
  %v52 = vpack.c.bf16 %v40, %v39
  %v53 = vpack.c.bf16 %v42, %v41
  %v54 = vpack.c.bf16 %v44, %v43
  %v55 = vpack.c.bf16 %v46, %v45
  %v56 = vpack.c.bf16 %v48, %v47
  %v57 = vld [vmem:[%s1] sm:$0xf]
  %v58 = vld [vmem:[%s1 + $0x4] sm:$0xf]
  %v59 = vld [vmem:[%s1 + $0x8] sm:$0xf]
  %v60 = vld [vmem:[%s1 + $0xc] sm:$0xf]
  %v61 = vld [vmem:[%s2] sm:$0xff]
  %v62 = vld [vmem:[%s2 + $0x8] sm:$0xff]
  %v63 = vld [vmem:[%s2 + $0x10] sm:$0xff]
  %v64 = vld [vmem:[%s2 + $0x18] sm:$0xff]
  %66 = vset.pattern.permute.xlu0 0
  %67 = vperm.xlu0 %66, %v61
  %v68 = vpop.permute.xlu0 %67
  %71 = vset.pattern.permute.xlu0 0
  %72 = vperm.xlu0 %71, %v62
  %v73 = vpop.permute.xlu0 %72
  %76 = vset.pattern.permute.xlu0 0
  %77 = vperm.xlu0 %76, %v63
  %v78 = vpop.permute.xlu0 %77
  %81 = vset.pattern.permute.xlu0 0
  %82 = vperm.xlu0 %81, %v64
  %v83 = vpop.permute.xlu0 %82
  %v89 = vunpack.c.l.b16 %v57
  %v90 = vunpack.c.l.b16 %v58
  %v91 = vunpack.c.l.b16 %v59
  %v92 = vunpack.c.l.b16 %v60
  %v93 = vpack.c.b16 %v90, %v89
  %v94 = vpack.c.b16 %v92, %v91
  %vm95 = vcmask 162816
  %v97 = vsel %vm95, %v93, 0
  %v100 = vsel %vm95, %v94, 0
  %v103 = vsel %vm95, %v49, 0
  %v106 = vsel %vm95, %v50, 0
  %v109 = vsel %vm95, %v51, 0
  %v112 = vsel %vm95, %v52, 0
  %v115 = vsel %vm95, %v53, 0
  %v118 = vsel %vm95, %v54, 0
  %v121 = vsel %vm95, %v55, 0
  %v124 = vsel %vm95, %v56, 0
  %126 = vmatprep.subr.bf16.mxu0 0
  %127 = vmatpush1.bf16.xpose.msra.mxu0 %v103
  %128 = vmatprep.subr.bf16.mxu0 0
  %129 = vmatpush1.bf16.xpose.msra.mxu0 %v106
  %130 = vmatprep.subr.bf16.mxu0 0
  %131 = vmatpush1.bf16.xpose.msra.mxu0 %v109
  %132 = vmatprep.subr.bf16.mxu0 0
  %133 = vmatpush1.bf16.xpose.msra.mxu0 %v112
  %134 = vmatprep.subr.bf16.mxu0 0
  %135 = vmatpush1.bf16.xpose.msra.mxu0 %v115
  %136 = vmatprep.subr.bf16.mxu0 0
  %137 = vmatpush1.bf16.xpose.msra.mxu0 %v118
  %138 = vmatprep.subr.bf16.mxu0 0
  %139 = vmatpush1.bf16.xpose.msra.mxu0 %v121
  %140 = vmatprep.subr.bf16.mxu0 0
  %141 = vmatpush1.bf16.xpose.msra.mxu0 %v124
  %142 = vmatprep.subr.bf16.mxu0 0
  %143 = vmatpush1.bf16.xpose.msra.mxu0 0
  %144 = vmatprep.subr.bf16.mxu0 0
  %145 = vmatpush1.bf16.xpose.msra.mxu0 0
  %146 = vmatprep.subr.bf16.mxu0 0
  %147 = vmatpush1.bf16.xpose.msra.mxu0 0
  %148 = vmatprep.subr.bf16.mxu0 0
  %149 = vmatpush1.bf16.xpose.msra.mxu0 0
  %150 = vmatprep.subr.bf16.mxu0 0
  %151 = vmatpush1.bf16.xpose.msra.mxu0 0
  %152 = vmatprep.subr.bf16.mxu0 0
  %153 = vmatpush1.bf16.xpose.msra.mxu0 0
  %154 = vmatprep.subr.bf16.mxu0 0
  %155 = vmatpush1.bf16.xpose.msra.mxu0 0
  %156 = vmatprep.subr.bf16.mxu0 0
  %157 = vmatpush1.bf16.xpose.msra.mxu0 0
  %158 = vmatprep.mubr.bf16.mxu0 0
  %159 = vmatmul.mubr.bf16.gmra.mrb[0].mxu0 %v97
  %v160 = vpop.f32.mrb[0].mxu0
  %v161 = vadd.f32 %v68, %v160
  %v162 = vpop.f32.mrb[0].mxu0
  %v163 = vpop.f32.mrb[0].mxu0
  %v164 = vadd.f32 %v73, %v163
  %v165 = vpop.f32.mrb[0].mxu0
  %166 = vmatprep.mubr.bf16.mxu0 0
  %167 = vmatmul.mubr.bf16.gmra.mrb[0].mxu0 %v100
  %v168 = vpop.f32.mrb[0].mxu0
  %v169 = vadd.f32 %v78, %v168
  %v170 = vpop.f32.mrb[0].mxu0
  %v171 = vpop.f32.mrb[0].mxu0
  %v172 = vadd.f32 %v83, %v171
  %v173 = vpop.f32.mrb[0].mxu0
  %174 = vdwg.mxu0
  %v175 = vmax.f32 %v161, 0.0
  %v176 = vmax.f32 %v164, 0.0
  %v177 = vmax.f32 %v169, 0.0
  %v178 = vmax.f32 %v172, 0.0
  %v179 = vld [vmem:[%s3] sm:$0xf]
  %v180 = vld [vmem:[%s3 + $0x4] sm:$0xf]
  %v181 = vpack.c.bf16 %v176, %v175
  %v182 = vpack.c.bf16 %v178, %v177
  %v183 = vld [vmem:[%s4] sm:$0xff]
  %v184 = vld [vmem:[%s4 + $0x8] sm:$0xff]
  %186 = vset.pattern.permute.xlu0 0
  %187 = vperm.xlu0 %186, %v183
  %v188 = vpop.permute.xlu0 %187
  %191 = vset.pattern.permute.xlu0 0
  %192 = vperm.xlu0 %191, %v184
  %v193 = vpop.permute.xlu0 %192
  %v197 = vunpack.c.l.b16 %v179
  %v198 = vunpack.c.l.b16 %v180
  %v199 = vpack.c.b16 %v198, %v197
  %vm200 = vcmask 261120
  %v202 = vsel %vm200, %v199, 0
  %204 = vmatprep.subr.bf16.mxu0 0
  %205 = vmatpush1.bf16.msra.mxu0 %v181
  %206 = vmatprep.subr.bf16.mxu0 0
  %207 = vmatpush1.bf16.msra.mxu0 %v182
  %208 = vmatprep.subr.bf16.mxu0 0
  %209 = vmatpush1.bf16.msra.mxu0 0
  %210 = vmatprep.subr.bf16.mxu0 0
  %211 = vmatpush1.bf16.msra.mxu0 0
  %212 = vmatprep.subr.bf16.mxu0 0
  %213 = vmatpush1.bf16.msra.mxu0 0
  %214 = vmatprep.subr.bf16.mxu0 0
  %215 = vmatpush1.bf16.msra.mxu0 0
  %216 = vmatprep.subr.bf16.mxu0 0
  %217 = vmatpush1.bf16.msra.mxu0 0
  %218 = vmatprep.subr.bf16.mxu0 0
  %219 = vmatpush1.bf16.msra.mxu0 0
  %220 = vmatprep.subr.bf16.mxu0 0
  %221 = vmatpush1.bf16.msra.mxu0 0
  %222 = vmatprep.subr.bf16.mxu0 0
  %223 = vmatpush1.bf16.msra.mxu0 0
  %224 = vmatprep.subr.bf16.mxu0 0
  %225 = vmatpush1.bf16.msra.mxu0 0
  %226 = vmatprep.subr.bf16.mxu0 0
  %227 = vmatpush1.bf16.msra.mxu0 0
  %228 = vmatprep.subr.bf16.mxu0 0
  %229 = vmatpush1.bf16.msra.mxu0 0
  %230 = vmatprep.subr.bf16.mxu0 0
  %231 = vmatpush1.bf16.msra.mxu0 0
  %232 = vmatprep.subr.bf16.mxu0 0
  %233 = vmatpush1.bf16.msra.mxu0 0
  %234 = vmatprep.subr.bf16.mxu0 0
  %235 = vmatpush1.bf16.msra.mxu0 0
  %236 = vmatprep.mubr.bf16.mxu0 0
  %237 = vmatmul.mubr.bf16.gmra.mrb[0].mxu0 %v202
  %v238 = vpop.f32.mrb[0].mxu0
  %v239 = vadd.f32 %v188, %v238
  %v240 = vpop.f32.mrb[0].mxu0
  %v241 = vpop.f32.mrb[0].mxu0
  %v242 = vadd.f32 %v193, %v241
  %v243 = vpop.f32.mrb[0].mxu0
  %244 = vdwg.mxu0
  %v245 = vmax.f32 %v239, 0.0
  %v246 = vmax.f32 %v242, 0.0
  %v247 = vld [vmem:[%s5] sm:$0xf]
  %v248 = vld [vmem:[%s5 + $0x4] sm:$0xf]
  %v249 = vld [vmem:[%s5 + $0x8] sm:$0xf]
  %v250 = vld [vmem:[%s5 + $0xc] sm:$0xf]
  %v251 = vpack.c.bf16 %v246, %v245
  %v252 = vld [vmem:[%s6] sm:$0xff]
  %v253 = vld [vmem:[%s6 + $0x8] sm:$0xff]
  %v254 = vld [vmem:[%s6 + $0x10] sm:$0xff]
  %v255 = vld [vmem:[%s6 + $0x18] sm:$0xff]
  %257 = vset.pattern.permute.xlu0 0
  %258 = vperm.xlu0 %257, %v252
  %v259 = vpop.permute.xlu0 %258
  %262 = vset.pattern.permute.xlu0 0
  %263 = vperm.xlu0 %262, %v253
  %v264 = vpop.permute.xlu0 %263
  %267 = vset.pattern.permute.xlu0 0
  %268 = vperm.xlu0 %267, %v254
  %v269 = vpop.permute.xlu0 %268
  %272 = vset.pattern.permute.xlu0 0
  %273 = vperm.xlu0 %272, %v255
  %v274 = vpop.permute.xlu0 %273
  %v280 = vunpack.c.l.b16 %v247
  %v281 = vunpack.c.l.b16 %v248
  %v282 = vunpack.c.l.b16 %v249
  %v283 = vunpack.c.l.b16 %v250
  %v284 = vpack.c.b16 %v281, %v280
  %v285 = vpack.c.b16 %v283, %v282
  %vm286 = vcmask 130048
  %v288 = vsel %vm286, %v284, 0
  %v291 = vsel %vm286, %v285, 0
  %293 = vmatprep.subr.bf16.mxu0 0
  %294 = vmatpush1.bf16.msra.mxu0 %v251
  %295 = vmatprep.subr.bf16.mxu0 0
  %296 = vmatpush1.bf16.msra.mxu0 0
  %297 = vmatprep.subr.bf16.mxu0 0
  %298 = vmatpush1.bf16.msra.mxu0 0
  %299 = vmatprep.subr.bf16.mxu0 0
  %300 = vmatpush1.bf16.msra.mxu0 0
  %301 = vmatprep.subr.bf16.mxu0 0
  %302 = vmatpush1.bf16.msra.mxu0 0
  %303 = vmatprep.subr.bf16.mxu0 0
  %304 = vmatpush1.bf16.msra.mxu0 0
  %305 = vmatprep.subr.bf16.mxu0 0
  %306 = vmatpush1.bf16.msra.mxu0 0
  %307 = vmatprep.subr.bf16.mxu0 0
  %308 = vmatpush1.bf16.msra.mxu0 0
  %309 = vmatprep.subr.bf16.mxu0 0
  %310 = vmatpush1.bf16.msra.mxu0 0
  %311 = vmatprep.subr.bf16.mxu0 0
  %312 = vmatpush1.bf16.msra.mxu0 0
  %313 = vmatprep.subr.bf16.mxu0 0
  %314 = vmatpush1.bf16.msra.mxu0 0
  %315 = vmatprep.subr.bf16.mxu0 0
  %316 = vmatpush1.bf16.msra.mxu0 0
  %317 = vmatprep.subr.bf16.mxu0 0
  %318 = vmatpush1.bf16.msra.mxu0 0
  %319 = vmatprep.subr.bf16.mxu0 0
  %320 = vmatpush1.bf16.msra.mxu0 0
  %321 = vmatprep.subr.bf16.mxu0 0
  %322 = vmatpush1.bf16.msra.mxu0 0
  %323 = vmatprep.subr.bf16.mxu0 0
  %324 = vmatpush1.bf16.msra.mxu0 0
  %325 = vmatprep.mubr.bf16.mxu0 0
  %326 = vmatmul.mubr.bf16.gmra.mrb[0].mxu0 %v288
  %v327 = vpop.f32.mrb[0].mxu0
  %v328 = vadd.f32 %v259, %v327
  %v329 = vpop.f32.mrb[0].mxu0
  %v330 = vpop.f32.mrb[0].mxu0
  %v331 = vadd.f32 %v264, %v330
  %v332 = vpop.f32.mrb[0].mxu0
  %333 = vmatprep.mubr.bf16.mxu0 0
  %334 = vmatmul.mubr.bf16.gmra.mrb[0].mxu0 %v291
  %v335 = vpop.f32.mrb[0].mxu0
  %v336 = vadd.f32 %v269, %v335
  %v337 = vpop.f32.mrb[0].mxu0
  %v338 = vpop.f32.mrb[0].mxu0
  %v339 = vadd.f32 %v274, %v338
  %v340 = vpop.f32.mrb[0].mxu0
  %341 = vdwg.mxu0
  %v342 = vmax.f32 %v328, 0.0
  %v343 = vmax.f32 %v331, 0.0
  %v344 = vmax.f32 %v336, 0.0
  %v345 = vmax.f32 %v339, 0.0
  %v346 = vld [vmem:[%s7] sm:$0xf]
  %v347 = vld [vmem:[%s7 + $0x4] sm:$0xf]
  %v348 = vld [vmem:[%s7 + $0x8] sm:$0xf]
  %v349 = vpack.c.bf16 %v343, %v342
  %v350 = vpack.c.bf16 %v345, %v344
  %v351 = vld [vmem:[%s8] sm:$0xff]
  %v352 = vld [vmem:[%s8 + $0x8] sm:$0xff]
  %v353 = vld [vmem:[%s8 + $0x10] sm:$0xff]
  %355 = vset.pattern.permute.xlu0 0
  %356 = vperm.xlu0 %355, %v351
  %v357 = vpop.permute.xlu0 %356
  %360 = vset.pattern.permute.xlu0 0
  %361 = vperm.xlu0 %360, %v352
  %v362 = vpop.permute.xlu0 %361
  %365 = vset.pattern.permute.xlu0 0
  %366 = vperm.xlu0 %365, %v353
  %v367 = vpop.permute.xlu0 %366
  %v372 = vunpack.c.l.b16 %v346
  %v373 = vunpack.c.l.b16 %v347
  %v374 = vunpack.c.l.b16 %v348
  %v375 = vpack.c.b16 %v373, %v372
  %v376 = vpack.c.b16 %v374, %v374
  %v378 = vsel %vm200, %v375, 0
  %v381 = vsel %vm200, %v376, 0
  %383 = vmatprep.subr.bf16.mxu0 0
  %384 = vmatpush1.bf16.msra.mxu0 %v349
  %385 = vmatprep.subr.bf16.mxu0 0
  %386 = vmatpush1.bf16.msra.mxu0 %v350
  %387 = vmatprep.subr.bf16.mxu0 0
  %388 = vmatpush1.bf16.msra.mxu0 0
  %389 = vmatprep.subr.bf16.mxu0 0
  %390 = vmatpush1.bf16.msra.mxu0 0
  %391 = vmatprep.subr.bf16.mxu0 0
  %392 = vmatpush1.bf16.msra.mxu0 0
  %393 = vmatprep.subr.bf16.mxu0 0
  %394 = vmatpush1.bf16.msra.mxu0 0
  %395 = vmatprep.subr.bf16.mxu0 0
  %396 = vmatpush1.bf16.msra.mxu0 0
  %397 = vmatprep.subr.bf16.mxu0 0
  %398 = vmatpush1.bf16.msra.mxu0 0
  %399 = vmatprep.subr.bf16.mxu0 0
  %400 = vmatpush1.bf16.msra.mxu0 0
  %401 = vmatprep.subr.bf16.mxu0 0
  %402 = vmatpush1.bf16.msra.mxu0 0
  %403 = vmatprep.subr.bf16.mxu0 0
  %404 = vmatpush1.bf16.msra.mxu0 0
  %405 = vmatprep.subr.bf16.mxu0 0
  %406 = vmatpush1.bf16.msra.mxu0 0
  %407 = vmatprep.subr.bf16.mxu0 0
  %408 = vmatpush1.bf16.msra.mxu0 0
  %409 = vmatprep.subr.bf16.mxu0 0
  %410 = vmatpush1.bf16.msra.mxu0 0
  %411 = vmatprep.subr.bf16.mxu0 0
  %412 = vmatpush1.bf16.msra.mxu0 0
  %413 = vmatprep.subr.bf16.mxu0 0
  %414 = vmatpush1.bf16.msra.mxu0 0
  %415 = vmatprep.mubr.bf16.mxu0 0
  %416 = vmatmul.mubr.bf16.gmra.mrb[0].mxu0 %v378
  %v417 = vpop.f32.mrb[0].mxu0
  %v418 = vadd.f32 %v357, %v417
  %v419 = vpop.f32.mrb[0].mxu0
  %v420 = vpop.f32.mrb[0].mxu0
  %v421 = vadd.f32 %v362, %v420
  %v422 = vpop.f32.mrb[0].mxu0
  %423 = vmatprep.mubr.bf16.mxu0 0
  %424 = vmatmul.mubr.bf16.gmra.mrb[0].mxu0 %v381
  %v425 = vpop.f32.mrb[0].mxu0
  %v426 = vadd.f32 %v367, %v425
  %v427 = vpop.f32.mrb[0].mxu0
  %v428 = vpop.f32.mrb[0].mxu0
  %v429 = vpop.f32.mrb[0].mxu0
  %430 = vdwg.mxu0
  %v431 = vxor.u32 %v418, 2147483648
  %v432 = vxor.u32 %v421, 2147483648
  %v433 = vxor.u32 %v426, 2147483648
  %v434 = vmul.f32 %v431, 1.442695
  %v435 = vpow.pop %v434
  %v436 = vmul.f32 %v432, 1.442695
  %v437 = vpow.pop %v436
  %v438 = vmul.f32 %v433, 1.442695
  %v439 = vpow.pop %v438
  %v440 = vadd.f32 %v435, 1.0
  %v441 = vadd.f32 %v437, 1.0
  %v442 = vadd.f32 %v439, 1.0
  %v443 = vrcp.pop %v440
  %v444 = vmul.f32 1.0, %v443
  %v445 = vrcp.pop %v441
  %v446 = vmul.f32 1.0, %v445
  %v447 = vrcp.pop %v442
  %v448 = vmul.f32 1.0, %v447
  %449 = vxpose.xlu0.b32.start [1/16] %v444, 128
  %450 = vxpose.xlu0.b32.cont [2/16] %v446, 128
  %451 = vxpose.xlu0.b32.cont [3/16] %v448, 128
  %452 = vxpose.xlu0.b32.cont [4/16] 0.0, 128
  %453 = vxpose.xlu0.b32.cont [5/16] 0.0, 128
  %454 = vxpose.xlu0.b32.cont [6/16] 0.0, 128
  %455 = vxpose.xlu0.b32.cont [7/16] 0.0, 128
  %456 = vxpose.xlu0.b32.cont [8/16] 0.0, 128
  %457 = vxpose.xlu0.b32.cont [9/16] 0.0, 128
  %458 = vxpose.xlu0.b32.cont [10/16] 0.0, 128
  %459 = vxpose.xlu0.b32.cont [11/16] 0.0, 128
  %460 = vxpose.xlu0.b32.cont [12/16] 0.0, 128
  %461 = vxpose.xlu0.b32.cont [13/16] 0.0, 128
  %462 = vxpose.xlu0.b32.cont [14/16] 0.0, 128
  %463 = vxpose.xlu0.b32.cont [15/16] 0.0, 128
  %464 = vxpose.xlu0.b32.end [16/16] 0.0, 128
  %v465 = vpop.trf.xlu0
  %v466 = vpop.trf.xlu0
  %v467 = vpop.trf.xlu0
  %v468 = vpop.trf.xlu0
  %v469 = vpop.trf.xlu0
  %v470 = vpop.trf.xlu0
  %v471 = vpop.trf.xlu0
  %v472 = vpop.trf.xlu0
  %v473 = vpop.trf.xlu0
  %v474 = vpop.trf.xlu0
  %v475 = vpop.trf.xlu0
  %v476 = vpop.trf.xlu0
  %v477 = vpop.trf.xlu0
  %v478 = vpop.trf.xlu0
  %v479 = vpop.trf.xlu0
  %v480 = vpop.trf.xlu0
  %481 = vst.msk [vmem:[%s9] sm:$0xff] %vm95, %v465
  %482 = vst.msk [vmem:[%s9 + $0x8] sm:$0xff] %vm95, %v466
  %483 = vst.msk [vmem:[%s9 + $0x10] sm:$0xff] %vm95, %v467
  %484 = vst.msk [vmem:[%s9 + $0x18] sm:$0xff] %vm95, %v468
  %485 = vst.msk [vmem:[%s9 + $0x20] sm:$0xff] %vm95, %v469
  %486 = vst.msk [vmem:[%s9 + $0x28] sm:$0xff] %vm95, %v470
  %487 = vst.msk [vmem:[%s9 + $0x30] sm:$0xff] %vm95, %v471
  %488 = vst.msk [vmem:[%s9 + $0x38] sm:$0xff] %vm95, %v472
  %489 = vst.msk [vmem:[%s9 + $0x40] sm:$0xff] %vm95, %v473
  %490 = vst.msk [vmem:[%s9 + $0x48] sm:$0xff] %vm95, %v474
  %491 = vst.msk [vmem:[%s9 + $0x50] sm:$0xff] %vm95, %v475
  %492 = vst.msk [vmem:[%s9 + $0x58] sm:$0xff] %vm95, %v476
  %493 = vst.msk [vmem:[%s9 + $0x60] sm:$0xff] %vm95, %v477
  %494 = vst.msk [vmem:[%s9 + $0x68] sm:$0xff] %vm95, %v478
  %495 = vst.msk [vmem:[%s9 + $0x70] sm:$0xff] %vm95, %v479
  %496 = vst.msk [vmem:[%s9 + $0x78] sm:$0xff] %vm95, %v480
  // Predicated region
  $region38: #{autoencoder_forward.1} parent=0 // pred_check
    _
  $region39: #{autoencoder_forward.1} parent=0 // pred_check_branch
    %498 = sbr.rel (0) target = $region41
  $region40: #{autoencoder_forward.1} parent=0 // pred_region
    _
  $region41: #{autoencoder_forward.1} parent=0 // pred_fallthru
    _
  // Predicated region
  $region42: #{autoencoder_forward.1} parent=0 // pred_check
    _
  $region43: #{autoencoder_forward.1} parent=0 // pred_check_branch
    %500 = sbr.rel (0) target = $region45
  $region44: #{autoencoder_forward.1} parent=0 // pred_region
    _
  $region45: #{autoencoder_forward.1} parent=0 // pred_fallthru
    _

</llo_original>
